<compile_context>
chip_gen: v5e
topology: v5e:2x2
jax: 0.10.0
libtpu: 0.0.40
codegen_flags: <defaults>
</compile_context>

<pallas_src>
import math

import jax
import jax.numpy as jnp
from jax import lax
from jax.experimental import pallas as pl
from jax.experimental.pallas import tpu as pltpu


# ----------------------------------------------------------------------------
# Pass 1: 3x3 conv (single im2col matmul) + per-tile BN sum / sum-of-squares
# ----------------------------------------------------------------------------
def conv_stats_kernel(x_ref, w_ref, conv_ref, stats_ref, xflat_ref, cols_ref):
    """
    x_ref:     (1, Cin, H, W)      one input image (NCHW), full spatial extent
    w_ref:     (Cout, 9*Cin)       weights, column = (dy*3+dx)*Cin + cin
    conv_ref:  (1, Cout, TH*W)     conv activation for this row tile (lane-dense)
    stats_ref: (1, 1, Cout, 2)     per-tile [sum, sum-of-squares]
    xflat_ref: (Cin, Lp)           flat tile+halo: [main(TH*W) | bot(W) | pad | top(W)]
    cols_ref:  (9*Cin, TH*W)       explicit im2col operand (matmul dtype)
    """
    _, cin, H, W = x_ref.shape
    thw = conv_ref.shape[2]
    TH = thw // W
    Lp = xflat_ref.shape[1]

    h = pl.program_id(1)
    nh = pl.num_programs(1)
    row0 = pl.multiple_of(h * TH, TH)

    # ---- build the flat, zero-halo'd tile (memset-free: every slot is written) ----
    tile = x_ref[0, :, pl.ds(row0, TH), :]                       # (Cin, TH, W) f32
    xflat_ref[:, 0:thw] = tile.reshape(cin, thw)                 # one relayout / tile

    top = x_ref[0, :, pl.ds(jnp.maximum(row0 - 1, 0), 1), :].reshape(cin, W)
    bot = x_ref[0, :, pl.ds(jnp.minimum(row0 + TH, H - 1), 1), :].reshape(cin, W)
    # top halo lives at the END of the buffer so circular rolls wrap onto it and
    # the big main store stays lane-aligned at offset 0.
    xflat_ref[:, Lp - W:Lp] = jnp.where(h > 0, top, 0.0)         # zero at image top
    xflat_ref[:, thw:thw + W] = jnp.where(h < nh - 1, bot, 0.0)  # zero at image bottom

    # column-validity masks for the left/right zero padding (dx = 0 / dx = 2 taps)
    col = lax.broadcasted_iota(jnp.int32, (1, thw), 1) % W
    ok_l = col != 0
    ok_r = col != (W - 1)

    # ---- im2col: 9 taps via XLU rolls on the lane-aligned flat buffer ----
    xflat = xflat_ref[...]                                       # (Cin, Lp) f32
    mdt = cols_ref.dtype
    for dy in range(3):
        for dx in range(3):
            # tap(dy,dx)[p] = xrows_flat[p + dy*W + dx - 1]  (top halo wraps around)
            shift = (W - (dy * W + dx - 1)) % Lp                 # static
            rolled = xflat if shift == 0 else pltpu.roll(xflat, shift=shift, axis=1)
            tap = rolled[:, 0:thw]                               # lane-aligned slice
            if dx == 0:
                tap = jnp.where(ok_l, tap, 0.0)
            elif dx == 2:
                tap = jnp.where(ok_r, tap, 0.0)
            k = (dy * 3 + dx) * cin
            cols_ref[k:k + cin, :] = tap.astype(mdt)

    # ---- single MXU matmul, K = 9*Cin; f32 accumulation ----
    acc = jnp.dot(w_ref[...], cols_ref[...],
                  preferred_element_type=jnp.float32)            # (Cout, TH*W) f32

    conv_ref[0] = acc.astype(conv_ref.dtype)

    # per-tile BN partials, computed from the f32 accumulator (VPU/XLU filler)
    stats_ref[0, 0, :, 0:1] = jnp.sum(acc, axis=-1, keepdims=True)
    stats_ref[0, 0, :, 1:2] = jnp.sum(acc * acc, axis=-1, keepdims=True)


# ----------------------------------------------------------------------------
# Pass 2: y = conv * scale + shift  (per-channel affine), ReLU.  Fat 2-D tiles.
# ----------------------------------------------------------------------------
def bn_relu_kernel(conv_ref, scale_ref, shift_ref, o_ref):
    y = conv_ref[...].astype(jnp.float32) * scale_ref[...] + shift_ref[...]
    o_ref[...] = jnp.maximum(y, 0.0).astype(o_ref.dtype)


# ----------------------------------------------------------------------------
# Tiling helpers
# ----------------------------------------------------------------------------
def _pick_tile_rows(H, W, Cin, Cout, tile_rows, mm_bytes, cv_bytes,
                    scratch_budget=10 * 2**20):
    """Rows per tile: TH*W must be a multiple of 128 (lane-dense stores) and TH
    must divide H; among legal candidates pick the largest whose per-step
    scratch footprint fits the budget (VMEM knob for v5e/v6e/v7x)."""
    align = 128 // math.gcd(W, 128)

    def legal(th):
        return 0 < th <= H and H % th == 0 and ((th * W) % 128 == 0 or th == H)

    if tile_rows is not None and legal(tile_rows):
        return tile_rows

    def step_bytes(th):
        thw = th * W
        lp = -(-((th + 2) * W) // 128) * 128
        return (9 * Cin * thw * mm_bytes      # cols scratch
                + Cin * lp * 4                # flat tile+halo scratch (f32)
                + 2 * Cout * thw * cv_bytes   # conv output block (double-buffered)
                + Cout * thw * 4              # f32 accumulator value
                + 2 * Cin * thw * 4)          # rolled-tap temporaries

    cands = [d for d in range(align, H + 1, align) if H % d == 0]
    if not cands:
        return H                              # tiny/odd images: one full-image tile
    fitting = [d for d in cands if step_bytes(d) <= scratch_budget]
    return max(fitting) if fitting else cands[0]


def _pick_pass2_rows(NC, HW, in_bytes, target_bytes=4 * 2**20):
    """Rows per pass-2 block: ~4 MiB (in+out) tiles, multiple of 8, dividing NC."""
    per_row = HW * (in_bytes + 4)
    max_rows = max(8, target_bytes // max(per_row, 1))
    if NC <= max_rows or NC % 8 != 0:
        return NC                             # whole array as one (or few) blocks
    r = min((max_rows // 8) * 8, NC)
    while r >= 8 and NC % r != 0:
        r -= 8
    return r if r >= 8 else NC


# ----------------------------------------------------------------------------
# Wrapper
# ----------------------------------------------------------------------------
def conv_block_forward(x_nchw, w_oihw, b, gamma, beta, *, eps=1e-5,
                       tile_rows=None,
                       matmul_dtype=jnp.bfloat16,   # MXU input dtype (f32 for exactness)
                       conv_dtype=jnp.bfloat16):    # HBM conv-intermediate dtype
    """x_nchw: (N, Cin, H, W) f32  ->  (N, Cout, H, W) f32  (ConvBlock forward)."""
    x_nchw = x_nchw.astype(jnp.float32)
    N, Cin, H, W = x_nchw.shape
    Cout = w_oihw.shape[0]
    HW = H * W

    mm_bytes = jnp.dtype(matmul_dtype).itemsize
    cv_bytes = jnp.dtype(conv_dtype).itemsize

    TH = _pick_tile_rows(H, W, Cin, Cout, tile_rows, mm_bytes, cv_bytes)
    nh = H // TH
    THW = TH * W
    Lp = -(-((TH + 2) * W) // 128) * 128      # flat tile+halo, lanes padded to 128

    # (Cout, Cin, 3, 3) -> (Cout, 3, 3, Cin) -> (Cout, 9*Cin); column order matches
    # the in-kernel tap order (dy*3+dx)*Cin + cin.
    w2 = jnp.transpose(w_oihw, (0, 2, 3, 1)).reshape(Cout, 9 * Cin).astype(matmul_dtype)
    # Conv bias cancels under training-mode BN (mean is subtracted right after the
    # conv); NOT valid if reused with eval-mode running statistics.
    del b

    # VMEM budgeting: only raise the scoped limit when the estimate needs it.
    # TODO(synk): for very large images, replace the full-image x block with a
    # manual row-halo DMA (pl.ANY + make_async_copy) to drop the 2x image buffer.
    est = (2 * Cin * H * W * 4 + 2 * Cout * 9 * Cin * mm_bytes
           + 9 * Cin * THW * mm_bytes + Cin * Lp * 4
           + 2 * Cout * THW * cv_bytes + Cout * THW * 4 + 2 * Cin * THW * 4
           + (1 << 20))
    p1_params = dict(dimension_semantics=("parallel", "parallel"))
    if est > 12 * 2**20:
        p1_params["vmem_limit_bytes"] = min(int(est * 1.25), 48 * 2**20)

    conv_flat, stats = pl.pallas_call(
        conv_stats_kernel,
        out_shape=(jax.ShapeDtypeStruct((N, Cout, HW), conv_dtype),
                   jax.ShapeDtypeStruct((N, nh, Cout, 2), jnp.float32)),
        grid_spec=pltpu.PrefetchScalarGridSpec(
            num_scalar_prefetch=0,
            grid=(N, nh),
            in_specs=[
                pl.BlockSpec((1, Cin, H, W), lambda n, h: (n, 0, 0, 0)),
                # TODO(synk): pipeline_mode=pl.Buffered(1) for the grid-invariant
                # weights once single-buffering is validated on the target build.
                pl.BlockSpec((Cout, 9 * Cin), lambda n, h: (0, 0)),
            ],
            out_specs=(
                pl.BlockSpec((1, Cout, THW), lambda n, h: (n, 0, h)),
                pl.BlockSpec((1, 1, Cout, 2), lambda n, h: (n, h, 0, 0)),
            ),
            scratch_shapes=[
                pltpu.VMEM((Cin, Lp), jnp.float32),
                pltpu.VMEM((9 * Cin, THW), matmul_dtype),
            ],
        ),
        compiler_params=pltpu.CompilerParams(**p1_params),
    )(x_nchw, w2)

    # Tiny per-channel reduction + BN affine params (Cout elements) in plain JAX.
    # Biased variance (PyTorch training-mode BatchNorm); clamp E[x^2]-mean^2 >= 0.
    count = float(N * HW)
    sums = jnp.sum(stats.reshape(N * nh, Cout, 2), axis=0)       # (Cout, 2)
    mean = sums[:, 0] / count
    var = jnp.maximum(sums[:, 1] / count - mean * mean, 0.0)
    scale = gamma * lax.rsqrt(var + eps)
    shift = beta - mean * scale

    # Pass 2 on a flat (N*Cout, H*W) view with fat lane-dense tiles.
    NC = N * Cout
    TR = _pick_pass2_rows(NC, HW, cv_bytes)
    scale_rows = jnp.broadcast_to(scale[None, :], (N, Cout)).reshape(NC, 1)
    shift_rows = jnp.broadcast_to(shift[None, :], (N, Cout)).reshape(NC, 1)

    out2 = pl.pallas_call(
        bn_relu_kernel,
        out_shape=jax.ShapeDtypeStruct((NC, HW), jnp.float32),
        grid_spec=pltpu.PrefetchScalarGridSpec(
            num_scalar_prefetch=0,
            grid=(NC // TR,),
            in_specs=[
                pl.BlockSpec((TR, HW), lambda i: (i, 0)),
                pl.BlockSpec((TR, 1), lambda i: (i, 0)),
                pl.BlockSpec((TR, 1), lambda i: (i, 0)),
            ],
            out_specs=pl.BlockSpec((TR, HW), lambda i: (i, 0)),
        ),
        compiler_params=pltpu.CompilerParams(dimension_semantics=("parallel",)),
    )(conv_flat.reshape(NC, HW), scale_rows, shift_rows)

    # (N*Cout, H*W) -> (N, Cout, H, W) is a free contiguous reshape: NCHW out.
    return out2.reshape(N, Cout, H, W)


# ----------------------------------------------------------------------------
# Pure-JAX reference (PyTorch ConvBlock, norm='batch', training mode)
# ----------------------------------------------------------------------------
def _reference(x_nchw, w_oihw, b, gamma, beta, eps=1e-5):
    y = lax.conv_general_dilated(
        x_nchw, w_oihw, window_strides=(1, 1), padding=((1, 1), (1, 1)),
        dimension_numbers=("NCHW", "OIHW", "NCHW"))
    y = y + b.reshape(1, -1, 1, 1)
    mean = jnp.mean(y, axis=(0, 2, 3), keepdims=True)
    var = jnp.mean((y - mean) ** 2, axis=(0, 2, 3), keepdims=True)
    y = (y - mean) / jnp.sqrt(var + eps)
    y = y * gamma.reshape(1, -1, 1, 1) + beta.reshape(1, -1, 1, 1)
    return jnp.maximum(y, 0.0)


if __name__ == "__main__":
    N, Cin, Cout, H, W = 2, 4, 8, 16, 16

    key = jax.random.PRNGKey(0)
    kx, kw, kb = jax.random.split(key, 3)

    x = jax.random.normal(kx, (N, Cin, H, W), dtype=jnp.float32)
    fan_in = Cin * 3 * 3
    bound = 1.0 / (fan_in ** 0.5)
    w = jax.random.uniform(kw, (Cout, Cin, 3, 3), jnp.float32, -bound, bound)
    b = jax.random.uniform(kb, (Cout,), jnp.float32, -bound, bound)
    gamma = jnp.ones((Cout,), jnp.float32)
    beta = jnp.zeros((Cout,), jnp.float32)

    ref = _reference(x, w, b, gamma, beta)

    # Strict path (f32 MXU inputs + f32 intermediate) must match PyTorch numerics.
    # tile_rows=8 -> two row-tiles per image, exercising the halo/tiling path.
    out = conv_block_forward(x, w, b, gamma, beta, tile_rows=8,
                             matmul_dtype=jnp.float32, conv_dtype=jnp.float32)
    out = jax.block_until_ready(out)
    assert out.shape == (N, Cout, H, W)
    assert jnp.allclose(out, ref, atol=1e-4, rtol=1e-4), "f32 path mismatch vs reference"

    # Default fast path (bf16 MXU inputs + bf16 conv intermediate): loose tolerance.
    out_fast = conv_block_forward(x, w, b, gamma, beta, tile_rows=8)
    out_fast = jax.block_until_ready(out_fast)
    assert jnp.allclose(out_fast, ref, atol=1e-1, rtol=1e-1), "bf16 path mismatch vs reference"

    print("KERNEL_OK")
</pallas_src>

<mosaic_0001>
module attributes {stable_mosaic.version = 11 : i64} {
  func.func @conv_stats_kernel(%arg0: i32, %arg1: i32, %arg2: memref<1x4x16x16xf32, #tpu.memory_space<vmem>>, %arg3: memref<8x36xf32, #tpu.memory_space<vmem>>, %arg4: memref<1x8x128xf32, #tpu.memory_space<vmem>>, %arg5: memref<1x1x8x2xf32, #tpu.memory_space<vmem>>, %arg6: memref<4x256xf32, #tpu.memory_space<vmem>>, %arg7: memref<36x128xf32, #tpu.memory_space<vmem>>) attributes {dimension_semantics = [#tpu.dimension_semantics<parallel>, #tpu.dimension_semantics<parallel>], iteration_bounds = array<i64: 2, 2>, scalar_prefetch = 0 : i64, scratch_operands = 2 : i64, tpu.core_type = #tpu.core_type<tc>, window_params = [{transform_indices = @transform_0, window_bounds = array<i64: 1, 4, 16, 16>}, {pipeline_mode = #tpu.pipeline_mode<synchronous>, transform_indices = @transform_1, window_bounds = array<i64: 8, 36>}, {transform_indices = @transform_2, window_bounds = array<i64: 1, 8, 128>}, {transform_indices = @transform_3, window_bounds = array<i64: 1, 1, 8, 2>}]} {
    %c8_i32 = arith.constant 8 : i32
    %0 = arith.muli %arg1, %c8_i32 : i32
    %1 = tpu.assume_multiple %0, 8 : i32
    %c0 = arith.constant 0 : index
    %c0_0 = arith.constant 0 : index
    %2 = arith.index_cast %1 : i32 to index
    %c0_1 = arith.constant 0 : index
    %3 = vector.load %arg2[%c0, %c0_0, %2, %c0_1] : memref<1x4x16x16xf32, #tpu.memory_space<vmem>>, vector<1x4x8x16xf32>
    %4 = vector.shape_cast %3 : vector<1x4x8x16xf32> to vector<4x8x16xf32>
    %5 = vector.shape_cast %4 : vector<4x8x16xf32> to vector<4x128xf32>
    %c0_2 = arith.constant 0 : index
    %c0_3 = arith.constant 0 : index
    %6 = vector.load %arg6[%c0_2, %c0_3] : memref<4x256xf32, #tpu.memory_space<vmem>>, vector<4x128xf32>
    tpu.vector_store %arg6[%c0_2, %c0_3], %5 {strides = array<i32>} : memref<4x256xf32, #tpu.memory_space<vmem>>, vector<4x128xf32>,
    %c1_i32 = arith.constant 1 : i32
    %7 = arith.subi %1, %c1_i32 : i32
    %c0_i32 = arith.constant 0 : i32
    %8 = arith.maxsi %7, %c0_i32 : i32
    %c0_4 = arith.constant 0 : index
    %c0_5 = arith.constant 0 : index
    %9 = arith.index_cast %8 : i32 to index
    %c0_6 = arith.constant 0 : index
    %10 = vector.load %arg2[%c0_4, %c0_5, %9, %c0_6] : memref<1x4x16x16xf32, #tpu.memory_space<vmem>>, vector<1x4x1x16xf32>
    %11 = vector.shape_cast %10 : vector<1x4x1x16xf32> to vector<4x1x16xf32>
    %12 = vector.shape_cast %11 : vector<4x1x16xf32> to vector<4x16xf32>
    %c8_i32_7 = arith.constant 8 : i32
    %13 = arith.addi %1, %c8_i32_7 : i32
    %c15_i32 = arith.constant 15 : i32
    %14 = arith.minsi %13, %c15_i32 : i32
    %c0_8 = arith.constant 0 : index
    %c0_9 = arith.constant 0 : index
    %15 = arith.index_cast %14 : i32 to index
    %c0_10 = arith.constant 0 : index
    %16 = vector.load %arg2[%c0_8, %c0_9, %15, %c0_10] : memref<1x4x16x16xf32, #tpu.memory_space<vmem>>, vector<1x4x1x16xf32>
    %17 = vector.shape_cast %16 : vector<1x4x1x16xf32> to vector<4x1x16xf32>
    %18 = vector.shape_cast %17 : vector<4x1x16xf32> to vector<4x16xf32>
    %c0_i32_11 = arith.constant 0 : i32
    %19 = arith.cmpi sgt, %arg1, %c0_i32_11 : i32
    %cst = arith.constant 0.000000e+00 : f32
    %20 = vector.broadcast %cst : f32 to vector<4x16xf32>
    %21 = arith.select %19, %12, %20 : vector<4x16xf32>
    %c0_12 = arith.constant 0 : index
    %c240 = arith.constant 240 : index
    %22 = vector.load %arg6[%c0_12, %c240] : memref<4x256xf32, #tpu.memory_space<vmem>>, vector<4x16xf32>
    tpu.vector_store %arg6[%c0_12, %c240], %21 {strides = array<i32>} : memref<4x256xf32, #tpu.memory_space<vmem>>, vector<4x16xf32>,
    %c1_i32_13 = arith.constant 1 : i32
    %23 = arith.cmpi slt, %arg1, %c1_i32_13 : i32
    %cst_14 = arith.constant 0.000000e+00 : f32
    %24 = vector.broadcast %cst_14 : f32 to vector<4x16xf32>
    %25 = arith.select %23, %18, %24 : vector<4x16xf32>
    %c0_15 = arith.constant 0 : index
    %c128 = arith.constant 128 : index
    %26 = vector.load %arg6[%c0_15, %c128] : memref<4x256xf32, #tpu.memory_space<vmem>>, vector<4x16xf32>
    tpu.vector_store %arg6[%c0_15, %c128], %25 {strides = array<i32>} : memref<4x256xf32, #tpu.memory_space<vmem>>, vector<4x16xf32>,
    %27 = tpu.iota {dimensions = array<i32: 1>} : vector<1x128xi32>
    %c16_i32 = arith.constant 16 : i32
    %c0_i32_16 = arith.constant 0 : i32
    %28 = arith.cmpi eq, %c16_i32, %c0_i32_16 : i32
    %c1_i32_17 = arith.constant 1 : i32
    %29 = arith.select %28, %c1_i32_17, %c16_i32 : i32
    %30 = vector.broadcast %29 : i32 to vector<1x128xi32>
    %31 = arith.remsi %27, %30 : vector<1x128xi32>
    %c0_i32_18 = arith.constant 0 : i32
    %32 = vector.broadcast %c0_i32_18 : i32 to vector<1x128xi32>
    %33 = arith.cmpi ne, %31, %32 : vector<1x128xi32>
    %c0_i32_19 = arith.constant 0 : i32
    %34 = vector.broadcast %c0_i32_19 : i32 to vector<1x128xi32>
    %35 = arith.cmpi slt, %31, %34 : vector<1x128xi32>
    %c0_i32_20 = arith.constant 0 : i32
    %36 = arith.cmpi slt, %29, %c0_i32_20 : i32
    %37 = vector.broadcast %36 : i1 to vector<1x128xi1>
    %38 = vector.broadcast %37 : vector<1x128xi1> to vector<1x128xi1>
    %39 = arith.xori %35, %38 : vector<1x128xi1>
    %40 = arith.andi %39, %33 : vector<1x128xi1>
    %41 = vector.broadcast %29 : i32 to vector<1x128xi32>
    %42 = arith.addi %31, %41 : vector<1x128xi32>
    %43 = arith.select %40, %42, %31 : vector<1x128xi1>, vector<1x128xi32>
    %c0_i32_21 = arith.constant 0 : i32
    %44 = vector.broadcast %c0_i32_21 : i32 to vector<1x128xi32>
    %45 = arith.cmpi ne, %43, %44 : vector<1x128xi32>
    %c15_i32_22 = arith.constant 15 : i32
    %46 = vector.broadcast %c15_i32_22 : i32 to vector<1x128xi32>
    %47 = arith.cmpi ne, %43, %46 : vector<1x128xi32>
    %c0_23 = arith.constant 0 : index
    %c0_24 = arith.constant 0 : index
    %48 = vector.load %arg6[%c0_23, %c0_24] : memref<4x256xf32, #tpu.memory_space<vmem>>, vector<4x256xf32>
    %c17_i32 = arith.constant 17 : i32
    %49 = tpu.dynamic_rotate %48 by %c17_i32 dim 1 : vector<4x256xf32>, i32 -> vector<4x256xf32>
    %50 = vector.extract_strided_slice %49 {offsets = [0, 0], sizes = [4, 128], strides = [1, 1]} : vector<4x256xf32> to vector<4x128xf32>
    %cst_25 = arith.constant 0.000000e+00 : f32
    %51 = vector.shape_cast %45 : vector<1x128xi1> to vector<1x128xi1>
    %52 = vector.broadcast %51 : vector<1x128xi1> to vector<4x128xi1>
    %53 = vector.broadcast %cst_25 : f32 to vector<4x128xf32>
    %54 = arith.select %52, %50, %53 : vector<4x128xi1>, vector<4x128xf32>
    %c0_26 = arith.constant 0 : index
    %c0_27 = arith.constant 0 : index
    %55 = vector.load %arg7[%c0_26, %c0_27] : memref<36x128xf32, #tpu.memory_space<vmem>>, vector<4x128xf32>
    tpu.vector_store %arg7[%c0_26, %c0_27], %54 {strides = array<i32>} : memref<36x128xf32, #tpu.memory_space<vmem>>, vector<4x128xf32>,
    %c16_i32_28 = arith.constant 16 : i32
    %56 = tpu.dynamic_rotate %48 by %c16_i32_28 dim 1 : vector<4x256xf32>, i32 -> vector<4x256xf32>
    %57 = vector.extract_strided_slice %56 {offsets = [0, 0], sizes = [4, 128], strides = [1, 1]} : vector<4x256xf32> to vector<4x128xf32>
    %c4 = arith.constant 4 : index
    %c0_29 = arith.constant 0 : index
    %58 = vector.load %arg7[%c4, %c0_29] : memref<36x128xf32, #tpu.memory_space<vmem>>, vector<4x128xf32>
    tpu.vector_store %arg7[%c4, %c0_29], %57 {strides = array<i32>} : memref<36x128xf32, #tpu.memory_space<vmem>>, vector<4x128xf32>,
    %c15_i32_30 = arith.constant 15 : i32
    %59 = tpu.dynamic_rotate %48 by %c15_i32_30 dim 1 : vector<4x256xf32>, i32 -> vector<4x256xf32>
    %60 = vector.extract_strided_slice %59 {offsets = [0, 0], sizes = [4, 128], strides = [1, 1]} : vector<4x256xf32> to vector<4x128xf32>
    %cst_31 = arith.constant 0.000000e+00 : f32
    %61 = vector.shape_cast %47 : vector<1x128xi1> to vector<1x128xi1>
    %62 = vector.broadcast %61 : vector<1x128xi1> to vector<4x128xi1>
    %63 = vector.broadcast %cst_31 : f32 to vector<4x128xf32>
    %64 = arith.select %62, %60, %63 : vector<4x128xi1>, vector<4x128xf32>
    %c8 = arith.constant 8 : index
    %c0_32 = arith.constant 0 : index
    %65 = vector.load %arg7[%c8, %c0_32] : memref<36x128xf32, #tpu.memory_space<vmem>>, vector<4x128xf32>
    tpu.vector_store %arg7[%c8, %c0_32], %64 {strides = array<i32>} : memref<36x128xf32, #tpu.memory_space<vmem>>, vector<4x128xf32>,
    %c1_i32_33 = arith.constant 1 : i32
    %66 = tpu.dynamic_rotate %48 by %c1_i32_33 dim 1 : vector<4x256xf32>, i32 -> vector<4x256xf32>
    %67 = vector.extract_strided_slice %66 {offsets = [0, 0], sizes = [4, 128], strides = [1, 1]} : vector<4x256xf32> to vector<4x128xf32>
    %cst_34 = arith.constant 0.000000e+00 : f32
    %68 = vector.shape_cast %45 : vector<1x128xi1> to vector<1x128xi1>
    %69 = vector.broadcast %68 : vector<1x128xi1> to vector<4x128xi1>
    %70 = vector.broadcast %cst_34 : f32 to vector<4x128xf32>
    %71 = arith.select %69, %67, %70 : vector<4x128xi1>, vector<4x128xf32>
    %c12 = arith.constant 12 : index
    %c0_35 = arith.constant 0 : index
    %72 = vector.load %arg7[%c12, %c0_35] : memref<36x128xf32, #tpu.memory_space<vmem>>, vector<4x128xf32>
    tpu.vector_store %arg7[%c12, %c0_35], %71 {strides = array<i32>} : memref<36x128xf32, #tpu.memory_space<vmem>>, vector<4x128xf32>,
    %73 = vector.extract_strided_slice %48 {offsets = [0, 0], sizes = [4, 128], strides = [1, 1]} : vector<4x256xf32> to vector<4x128xf32>
    %c16 = arith.constant 16 : index
    %c0_36 = arith.constant 0 : index
    %74 = vector.load %arg7[%c16, %c0_36] : memref<36x128xf32, #tpu.memory_space<vmem>>, vector<4x128xf32>
    tpu.vector_store %arg7[%c16, %c0_36], %73 {strides = array<i32>} : memref<36x128xf32, #tpu.memory_space<vmem>>, vector<4x128xf32>,
    %c255_i32 = arith.constant 255 : i32
    %75 = tpu.dynamic_rotate %48 by %c255_i32 dim 1 : vector<4x256xf32>, i32 -> vector<4x256xf32>
    %76 = vector.extract_strided_slice %75 {offsets = [0, 0], sizes = [4, 128], strides = [1, 1]} : vector<4x256xf32> to vector<4x128xf32>
    %cst_37 = arith.constant 0.000000e+00 : f32
    %77 = vector.shape_cast %47 : vector<1x128xi1> to vector<1x128xi1>
    %78 = vector.broadcast %77 : vector<1x128xi1> to vector<4x128xi1>
    %79 = vector.broadcast %cst_37 : f32 to vector<4x128xf32>
    %80 = arith.select %78, %76, %79 : vector<4x128xi1>, vector<4x128xf32>
    %c20 = arith.constant 20 : index
    %c0_38 = arith.constant 0 : index
    %81 = vector.load %arg7[%c20, %c0_38] : memref<36x128xf32, #tpu.memory_space<vmem>>, vector<4x128xf32>
    tpu.vector_store %arg7[%c20, %c0_38], %80 {strides = array<i32>} : memref<36x128xf32, #tpu.memory_space<vmem>>, vector<4x128xf32>,
    %c241_i32 = arith.constant 241 : i32
    %82 = tpu.dynamic_rotate %48 by %c241_i32 dim 1 : vector<4x256xf32>, i32 -> vector<4x256xf32>
    %83 = vector.extract_strided_slice %82 {offsets = [0, 0], sizes = [4, 128], strides = [1, 1]} : vector<4x256xf32> to vector<4x128xf32>
    %cst_39 = arith.constant 0.000000e+00 : f32
    %84 = vector.shape_cast %45 : vector<1x128xi1> to vector<1x128xi1>
    %85 = vector.broadcast %84 : vector<1x128xi1> to vector<4x128xi1>
    %86 = vector.broadcast %cst_39 : f32 to vector<4x128xf32>
    %87 = arith.select %85, %83, %86 : vector<4x128xi1>, vector<4x128xf32>
    %c24 = arith.constant 24 : index
    %c0_40 = arith.constant 0 : index
    %88 = vector.load %arg7[%c24, %c0_40] : memref<36x128xf32, #tpu.memory_space<vmem>>, vector<4x128xf32>
    tpu.vector_store %arg7[%c24, %c0_40], %87 {strides = array<i32>} : memref<36x128xf32, #tpu.memory_space<vmem>>, vector<4x128xf32>,
    %c240_i32 = arith.constant 240 : i32
    %89 = tpu.dynamic_rotate %48 by %c240_i32 dim 1 : vector<4x256xf32>, i32 -> vector<4x256xf32>
    %90 = vector.extract_strided_slice %89 {offsets = [0, 0], sizes = [4, 128], strides = [1, 1]} : vector<4x256xf32> to vector<4x128xf32>
    %c28 = arith.constant 28 : index
    %c0_41 = arith.constant 0 : index
    %91 = vector.load %arg7[%c28, %c0_41] : memref<36x128xf32, #tpu.memory_space<vmem>>, vector<4x128xf32>
    tpu.vector_store %arg7[%c28, %c0_41], %90 {strides = array<i32>} : memref<36x128xf32, #tpu.memory_space<vmem>>, vector<4x128xf32>,
    %c239_i32 = arith.constant 239 : i32
    %92 = tpu.dynamic_rotate %48 by %c239_i32 dim 1 : vector<4x256xf32>, i32 -> vector<4x256xf32>
    %93 = vector.extract_strided_slice %92 {offsets = [0, 0], sizes = [4, 128], strides = [1, 1]} : vector<4x256xf32> to vector<4x128xf32>
    %cst_42 = arith.constant 0.000000e+00 : f32
    %94 = vector.shape_cast %47 : vector<1x128xi1> to vector<1x128xi1>
    %95 = vector.broadcast %94 : vector<1x128xi1> to vector<4x128xi1>
    %96 = vector.broadcast %cst_42 : f32 to vector<4x128xf32>
    %97 = arith.select %95, %93, %96 : vector<4x128xi1>, vector<4x128xf32>
    %c32 = arith.constant 32 : index
    %c0_43 = arith.constant 0 : index
    %98 = vector.load %arg7[%c32, %c0_43] : memref<36x128xf32, #tpu.memory_space<vmem>>, vector<4x128xf32>
    tpu.vector_store %arg7[%c32, %c0_43], %97 {strides = array<i32>} : memref<36x128xf32, #tpu.memory_space<vmem>>, vector<4x128xf32>,
    %c0_44 = arith.constant 0 : index
    %c0_45 = arith.constant 0 : index
    %99 = vector.load %arg3[%c0_44, %c0_45] : memref<8x36xf32, #tpu.memory_space<vmem>>, vector<8x36xf32>
    %c0_46 = arith.constant 0 : index
    %c0_47 = arith.constant 0 : index
    %100 = vector.load %arg7[%c0_46, %c0_47] : memref<36x128xf32, #tpu.memory_space<vmem>>, vector<36x128xf32>
    %cst_48 = arith.constant dense<0.000000e+00> : vector<8x128xf32>
    %101 = tpu.matmul %99, %100, %cst_48 {dimension_numbers = #tpu.dot_dimension_numbers<[1], [0], [0], [1], [0, 0, 1, 1], [], []>} : vector<8x36xf32>, vector<36x128xf32>, vector<8x128xf32> -> vector<8x128xf32>
    %c0_49 = arith.constant 0 : index
    %c0_50 = arith.constant 0 : index
    %c0_51 = arith.constant 0 : index
    %102 = vector.load %arg4[%c0_49, %c0_50, %c0_51] : memref<1x8x128xf32, #tpu.memory_space<vmem>>, vector<1x8x128xf32>
    %103 = vector.shape_cast %102 : vector<1x8x128xf32> to vector<8x128xf32>
    %104 = vector.shape_cast %101 : vector<8x128xf32> to vector<1x8x128xf32>
    tpu.vector_store %arg4[%c0_49, %c0_50, %c0_51], %104 {strides = array<i32>} : memref<1x8x128xf32, #tpu.memory_space<vmem>>, vector<1x8x128xf32>,
    %cst_52 = arith.constant dense<0.000000e+00> : vector<8xf32>
    %105 = vector.multi_reduction <add>, %101, %cst_52 [1] : vector<8x128xf32> to vector<8xf32>
    %106 = vector.shape_cast %105 : vector<8xf32> to vector<8x1xf32>
    %c0_53 = arith.constant 0 : index
    %c0_54 = arith.constant 0 : index
    %c0_55 = arith.constant 0 : index
    %c0_56 = arith.constant 0 : index
    %107 = vector.load %arg5[%c0_53, %c0_54, %c0_55, %c0_56] : memref<1x1x8x2xf32, #tpu.memory_space<vmem>>, vector<1x1x8x1xf32>
    %108 = vector.shape_cast %107 : vector<1x1x8x1xf32> to vector<8x1xf32>
    %109 = vector.shape_cast %106 : vector<8x1xf32> to vector<1x1x8x1xf32>
    tpu.vector_store %arg5[%c0_53, %c0_54, %c0_55, %c0_56], %109 {strides = array<i32>} : memref<1x1x8x2xf32, #tpu.memory_space<vmem>>, vector<1x1x8x1xf32>,
    %110 = arith.mulf %101, %101 : vector<8x128xf32>
    %cst_57 = arith.constant dense<0.000000e+00> : vector<8xf32>
    %111 = vector.multi_reduction <add>, %110, %cst_57 [1] : vector<8x128xf32> to vector<8xf32>
    %112 = vector.shape_cast %111 : vector<8xf32> to vector<8x1xf32>
    %c0_58 = arith.constant 0 : index
    %c0_59 = arith.constant 0 : index
    %c0_60 = arith.constant 0 : index
    %c1 = arith.constant 1 : index
    %113 = vector.load %arg5[%c0_58, %c0_59, %c0_60, %c1] : memref<1x1x8x2xf32, #tpu.memory_space<vmem>>, vector<1x1x8x1xf32>
    %114 = vector.shape_cast %113 : vector<1x1x8x1xf32> to vector<8x1xf32>
    %115 = vector.shape_cast %112 : vector<8x1xf32> to vector<1x1x8x1xf32>
    tpu.vector_store %arg5[%c0_58, %c0_59, %c0_60, %c1], %115 {strides = array<i32>} : memref<1x1x8x2xf32, #tpu.memory_space<vmem>>, vector<1x1x8x1xf32>,
    return
  }
  func.func @transform_0(%arg0: i32, %arg1: i32) -> (i32, i32, i32, i32) {
    %c0_i32 = arith.constant 0 : i32
    %c0_i32_0 = arith.constant 0 : i32
    %c0_i32_1 = arith.constant 0 : i32
    %c0_i32_2 = arith.constant 0 : i32
    return %arg0, %c0_i32, %c0_i32_0, %c0_i32_1 : i32, i32, i32, i32
  }
  func.func @transform_1(%arg0: i32, %arg1: i32) -> (i32, i32) {
    %c0_i32 = arith.constant 0 : i32
    %c0_i32_0 = arith.constant 0 : i32
    %c0_i32_1 = arith.constant 0 : i32
    return %c0_i32, %c0_i32_0 : i32, i32
  }
  func.func @transform_2(%arg0: i32, %arg1: i32) -> (i32, i32, i32) {
    %c0_i32 = arith.constant 0 : i32
    %c0_i32_0 = arith.constant 0 : i32
    return %arg0, %c0_i32, %arg1 : i32, i32, i32
  }
  func.func @transform_3(%arg0: i32, %arg1: i32) -> (i32, i32, i32, i32) {
    %c0_i32 = arith.constant 0 : i32
    %c0_i32_0 = arith.constant 0 : i32
    %c0_i32_1 = arith.constant 0 : i32
    return %arg0, %arg1, %c0_i32, %c0_i32_0 : i32, i32, i32, i32
  }
}

</mosaic_0001>

<llo_original>
// kernel: tpu_custom_call.1
$region0: #{tpu_custom_call.1}
  #allocation0 [shape = 'u32[]', space=smem, size = 0x4, offset = 0x4, fixed_abs, tag = 'smem constant byte address 0x4 - core index']
  #allocation1 [shape = 'u32[72,128]{1,0:T(1,128)}', space=vmem, size = 0x9000, scoped, tag = 'internal scratch']
  #allocation2 [shape = 'f32[4,256]{1,0:T(4,128)}', space=vmem, size = 0x1000, scoped, tag = 'scratch operand']
  #allocation3 [shape = 'f32[36,128]{1,0:T(8,128)}', space=vmem, size = 0x5000, scoped, tag = 'scratch operand']
  %s0 = inlined_call_operand.hbm [shape: f32[2,4,16,16], index: 0, kind: input, shape index: {}]
  %s1 = inlined_call_operand.hbm [shape: f32[8,36], index: 1, kind: input, shape index: {}]
  %s2 = inlined_call_operand.hbm [shape: f32[2,8,256], index: 2, kind: output, shape index: {0}]
  %s3 = inlined_call_operand.vmem [shape: f32[2,2,8,2], index: 3, kind: output, shape index: {1}]
  %4 = xla_tuple %s2, %s3
  %s5 = sld [smem:[#allocation0]]
  $region57: #{tpu_custom_call.1} parent=0
    _
  %s7 = ssub.s32 1, %s5
  %s8 = scalar_select 0, %s7, %s5
  $region1: #{tpu_custom_call.1} parent=0
    #allocation4 [shape = 'u8[65536]{0}', space=vmem, size = 0x10000, scoped, tag = 'input window, operand 0']
    #allocation5 [shape = 's32[2]{0}', space=sflag, size = 0x8, scoped, tag = 'scoped memory for tpu_custom_call.1']
    #allocation6 [shape = 's32[2]{0}', space=sflag, size = 0x8, scoped, tag = 'scoped memory for tpu_custom_call.1']
    #allocation7 [shape = 'u8[4096]{0}', space=vmem, size = 0x1000, scoped, tag = 'input window, operand 1, single buffered']
    #allocation8 [shape = 's32[1]{0}', space=sflag, size = 0x4, scoped, tag = 'scoped memory for tpu_custom_call.1']
    #allocation9 [shape = 'u8[8192]{0}', space=vmem, size = 0x2000, scoped, tag = 'output window, operand 0']
    %9 = vsyncpa [#allocation5], 0
    %s10 = scalar_lea.sflag [#allocation5], 1
    %11 = vsyncpa %s10, 0
    %12 = vsyncpa [#allocation8], 0
    %13 = vsyncpa [#allocation6], 0
    %s14 = scalar_lea.sflag [#allocation6], 1
    %15 = vsyncpa %s14, 0
    loop: start=0, step=1, limit=6
    $region2: #{tpu_custom_call.1} parent=1 // loop_pre_header
      _
    $region3: #{tpu_custom_call.1} parent=1 // loop_header
      %s17 = sphi 0, %s21
      %p18 = scmp.ge.s32.totalorder %s17, 6
      %s24 = sphi 0, %s36
      %s25 = sphi 0, %s32
      %s26 = sphi 0, %s24
      %s27 = sphi 0, %s25
      %s28 = sphi 0, %s26
      %s29 = sphi 0, %s27
      %s39 = sphi 0, %s41
      %s42 = sphi 0, %s39
      %s43 = sphi 0, %s42
      %s59 = sphi 0, %s43
      %s63 = sphi 0, %s63
      %s65 = sphi 0, %s63
      %s66 = sphi 0, %s65
      %s80 = sphi 0, %s66
      %s88 = sphi 0, %s90
      %s91 = sphi 0, %s88
      %s92 = sphi 0, %s91
      %s108 = sphi 0, %s92
      %s116 = sphi 0, %s118
      %s119 = sphi 0, %s116
      %s120 = sphi 0, %s119
      %s136 = sphi 0, %s120
    $region4: #{tpu_custom_call.1} parent=1 // loop_header_branch
      %20 = sbr.rel (%p18) target = $region8
    $region5: #{tpu_custom_call.1} parent=1 // loop_body
      %s22 = ssub.s32 %s17, 1
      %s23 = ssub.s32 %s17, 2
      %s30 = sadd.s32 1, %s25
      %p31 = scmp.ge.s32.totalorder %s30, 2
      %s32 = scalar_select %p31, 0, %s30
      %s33 = sadd.s32 1, %s24
      %s34 = scalar_select %p31, %s33, %s24
      %p35 = scmp.ge.s32.totalorder %s34, 2
      %s36 = scalar_select %p35, 0, %s34
      %s37 = ssub.s32 %s24, %s36
      %p38 = scmp.eq.s32.totalorder %s37, 0
      %s40 = sadd.s32 %s39, 1
      %s41 = scalar_select %p38, %s39, %s40
      %p44 = pneg %p38
      %p45 = scmp.eq.s32.totalorder %s17, 3
      %p46 = por %p44, %p45
      %p47 = scmp.ne.s32.totalorder %s39, %s42
      %p48 = scmp.eq.s32.totalorder %s17, 0
      %p49 = por %p47, %p48
      %p50 = scmp.ne.s32.totalorder %s39, %s42
      %p51 = scmp.eq.s32.totalorder %s22, 3
      %p52 = por %p50, %p51
      %p53 = scmp.ne.s32.totalorder %s42, %s43
      %p54 = scmp.eq.s32.totalorder %s22, 0
      %p55 = por %p53, %p54
      %p56 = scmp.ne.s32.totalorder %s42, %s43
      %p57 = scmp.eq.s32.totalorder %s23, 3
      %p58 = por %p56, %p57
      %p60 = scmp.ne.s32.totalorder %s43, %s59
      %p61 = scmp.eq.s32.totalorder %s23, 0
      %p62 = por %p60, %p61
      %s64 = sadd.s32 %s63, 1
      %p67 = scmp.eq.s32.totalorder %s17, 3
      %p68 = scmp.ne.s32.totalorder %s63, %s65
      %p69 = scmp.eq.s32.totalorder %s17, 0
      %p70 = por %p68, %p69
      %p71 = scmp.ne.s32.totalorder %s63, %s65
      %p72 = scmp.eq.s32.totalorder %s22, 3
      %p73 = por %p71, %p72
      %p74 = scmp.ne.s32.totalorder %s65, %s66
      %p75 = scmp.eq.s32.totalorder %s22, 0
      %p76 = por %p74, %p75
      %p77 = scmp.ne.s32.totalorder %s65, %s66
      %p78 = scmp.eq.s32.totalorder %s23, 3
      %p79 = por %p77, %p78
      %p81 = scmp.ne.s32.totalorder %s66, %s80
      %p82 = scmp.eq.s32.totalorder %s23, 0
      %p83 = por %p81, %p82
      %s84 = ssub.s32 %s24, %s36
      %s85 = ssub.s32 %s25, %s32
      %s86 = sor.u32 %s84, %s85
      %p87 = scmp.eq.s32.totalorder %s86, 0
      %s89 = sadd.s32 %s88, 1
      %s90 = scalar_select %p87, %s88, %s89
      %p93 = pneg %p87
      %p94 = scmp.eq.s32.totalorder %s17, 3
      %p95 = por %p93, %p94
      %p96 = scmp.ne.s32.totalorder %s88, %s91
      %p97 = scmp.eq.s32.totalorder %s17, 0
      %p98 = por %p96, %p97
      %p99 = scmp.ne.s32.totalorder %s88, %s91
      %p100 = scmp.eq.s32.totalorder %s22, 3
      %p101 = por %p99, %p100
      %p102 = scmp.ne.s32.totalorder %s91, %s92
      %p103 = scmp.eq.s32.totalorder %s22, 0
      %p104 = por %p102, %p103
      %p105 = scmp.ne.s32.totalorder %s91, %s92
      %p106 = scmp.eq.s32.totalorder %s23, 3
      %p107 = por %p105, %p106
      %p109 = scmp.ne.s32.totalorder %s92, %s108
      %p110 = scmp.eq.s32.totalorder %s23, 0
      %p111 = por %p109, %p110
      %s112 = ssub.s32 %s24, %s36
      %s113 = ssub.s32 %s25, %s32
      %s114 = sor.u32 %s112, %s113
      %p115 = scmp.eq.s32.totalorder %s114, 0
      %s117 = sadd.s32 %s116, 1
      %s118 = scalar_select %p115, %s116, %s117
      %p121 = pneg %p115
      %p122 = scmp.eq.s32.totalorder %s17, 3
      %p123 = por %p121, %p122
      %p124 = scmp.ne.s32.totalorder %s116, %s119
      %p125 = scmp.eq.s32.totalorder %s17, 0
      %p126 = por %p124, %p125
      %p127 = scmp.ne.s32.totalorder %s116, %s119
      %p128 = scmp.eq.s32.totalorder %s22, 3
      %p129 = por %p127, %p128
      %p130 = scmp.ne.s32.totalorder %s119, %s120
      %p131 = scmp.eq.s32.totalorder %s22, 0
      %p132 = por %p130, %p131
      %p133 = scmp.ne.s32.totalorder %s119, %s120
      %p134 = scmp.eq.s32.totalorder %s23, 3
      %p135 = por %p133, %p134
      %p137 = scmp.ne.s32.totalorder %s120, %s136
      %p138 = scmp.eq.s32.totalorder %s23, 0
      %p139 = por %p137, %p138
      %p140 = scmp.le.s32.totalorder 1, %s17
      %p141 = scmp.lt.s32.totalorder %s17, 5
      %p142 = pnand %p140, %p141
      %p143 = pneg %p142
      // Predicated region
      $region9: #{tpu_custom_call.1} parent=5 // pred_check
        _
      $region10: #{tpu_custom_call.1} parent=5 // pred_check_branch
        %145 = sbr.rel (%p142) target = $region12
      $region11: #{tpu_custom_call.1} parent=5 // pred_region
        %s146 = ssub.s32 %s17, 1
        // Predicated region
        $region13: #{tpu_custom_call.1} parent=11 // pred_check
          %p147 = pneg %p76
        $region14: #{tpu_custom_call.1} parent=11 // pred_check_branch
          %149 = sbr.rel (%p147) target = $region16
        $region15: #{tpu_custom_call.1} parent=11 // pred_region
          %151 = vsyncadd [#allocation8], 0
          %s153 = sshll.u32 %s1, 4
          %s154 = int_to_ptr.hbm [resolvable:$true] %s153
          %s155 = sshll.u32 [#allocation7], 4
          %s156 = int_to_ptr.vmem [resolvable:$true] %s155
          %158 = dma.hbm_to_vmem [thread:$0]  %s154, 128, %s156, [#allocation8]
        $region16: #{tpu_custom_call.1} parent=11 // pred_fallthru
          _
      $region12: #{tpu_custom_call.1} parent=5 // pred_fallthru
        _
      %p159 = scmp.lt.s32.totalorder %s17, 4
      // Predicated region
      $region17: #{tpu_custom_call.1} parent=5 // pred_check
        %p160 = pneg %p159
      $region18: #{tpu_custom_call.1} parent=5 // pred_check_branch
        %162 = sbr.rel (%p160) target = $region20
      $region19: #{tpu_custom_call.1} parent=5 // pred_region
        // Predicated region
        $region21: #{tpu_custom_call.1} parent=19 // pred_check
          %p163 = pneg %p49
        $region22: #{tpu_custom_call.1} parent=19 // pred_check_branch
          %165 = sbr.rel (%p163) target = $region24
        $region23: #{tpu_custom_call.1} parent=19 // pred_region
          %s166 = sand.u32 %s39, 1
          %s167 = scalar_lea.sflag [#allocation5], %s166
          %s168 = sand.u32 %s39, 1
          %s169 = smul.addr %s168, 64
          %s170 = scalar_lea.vmem [#allocation4], %s169
          %172 = vsyncadd %s167, 0
          %s173 = smul.addr %s24, 8
          %s174 = smul.addr %s173, 8
          %s175 = scalar_lea.hbm %s0, %s174
          %s176 = sshll.u32 %s175, 4
          %s177 = int_to_ptr.hbm [resolvable:$true] %s176
          %s178 = sshll.u32 %s170, 4
          %s179 = int_to_ptr.vmem [resolvable:$true] %s178
          %184 = dma.hbm_to_vmem [thread:$0]  %s177, 1024, %s179, %s167, 128, 128, 8
        $region24: #{tpu_custom_call.1} parent=19 // pred_fallthru
          _
      $region20: #{tpu_custom_call.1} parent=5 // pred_fallthru
        _
      %p185 = scmp.le.s32.totalorder 1, %s17
      %p186 = scmp.lt.s32.totalorder %s17, 5
      %p187 = pnand %p185, %p186
      %p188 = pneg %p187
      // Predicated region
      $region25: #{tpu_custom_call.1} parent=5 // pred_check
        _
      $region26: #{tpu_custom_call.1} parent=5 // pred_check_branch
        %190 = sbr.rel (%p187) target = $region28
      $region27: #{tpu_custom_call.1} parent=5 // pred_region
        %s191 = ssub.s32 %s17, 1
        %s192 = sand.u32 %s42, 1
        %s193 = scalar_lea.sflag [#allocation5], %s192
        %s194 = sand.u32 %s42, 1
        %s195 = smul.addr %s194, 64
        %s196 = scalar_lea.vmem [#allocation4], %s195
        // Predicated region
        $region29: #{tpu_custom_call.1} parent=27 // pred_check
          %p197 = pneg %p55
        $region30: #{tpu_custom_call.1} parent=27 // pred_check_branch
          %199 = sbr.rel (%p197) target = $region32
        $region31: #{tpu_custom_call.1} parent=27 // pred_region
          %201 = dma.done %s193, 1024
        $region32: #{tpu_custom_call.1} parent=27 // pred_fallthru
          _
        // Predicated region
        $region33: #{tpu_custom_call.1} parent=27 // pred_check
          %p202 = pneg %p76
        $region34: #{tpu_custom_call.1} parent=27 // pred_check_branch
          %204 = sbr.rel (%p202) target = $region36
        $region35: #{tpu_custom_call.1} parent=27 // pred_region
          %206 = dma.done [#allocation8], 128
        $region36: #{tpu_custom_call.1} parent=27 // pred_fallthru
          _
        %s207 = sand.u32 %s42, 1
        %s208 = scalar_lea.sflag [#allocation5], %s207
        %s209 = sand.u32 %s42, 1
        %s210 = smul.addr %s209, 64
        %s211 = scalar_lea.vmem [#allocation4], %s210
        %p212 = pneg %p55
        %p213 = pneg %p52
        %p214 = pneg %p76
        %p215 = pneg %p73
        %p216 = pneg %p104
        %p217 = pneg %p101
        %s218 = sand.u32 %s91, 1
        %s219 = scalar_lea.sflag [#allocation6], %s218
        %s220 = sand.u32 %s91, 1
        %s221 = smul.addr %s220, 8
        %s222 = scalar_lea.vmem [#allocation9], %s221
        %p223 = pneg %p132
        %p224 = pneg %p129
        %p225 = scmp.lt.s32.totalorder %s26, 1
        %s226 = scalar_select %p225, %s26, 1
        %p227 = scmp.lt.s32.totalorder %s27, 1
        %s228 = scalar_select %p227, %s27, 1
        %s229 = smul.addr %s226, 2
        %s230 = sadd.s32 %s228, %s229
        %s231 = smul.addr %s230, 8
        %s232 = scalar_lea.vmem %s3, %s231
        %p233 = scmp.lt.s32.totalorder %s26, 1
        %s234 = scalar_select %p233, %s26, 1
        %p235 = scmp.lt.s32.totalorder %s27, 1
        %s236 = scalar_select %p235, %s27, 1
        %s237 = smul.addr %s234, 2
        %s238 = sadd.s32 %s236, %s237
        %s239 = smul.addr %s238, 8
        %s240 = scalar_lea.vmem %s3, %s239
        %s241 = smul.u32 %s27, 8
        %s242 = scalar_lea.vmem %s196, %s241 [#allocation4]
        %v243 = vld [vmem:[%s242] sm:$0xff]
        %v244 = vld [vmem:[%s242 + $0x10] sm:$0xff]
        %v245 = vld [vmem:[%s242 + $0x20] sm:$0xff]
        %v246 = vld [vmem:[%s242 + $0x30] sm:$0xff]
        %v247 = vrot.slane %v245, 4
        %vm248 = vcmask 1047556
        %v249 = vsel %vm248, %v247, %v243
        %v250 = vrot.slane %v243, 4
        %v251 = vsel %vm248, %v245, %v250
        %v253 = vunpack.c.l.s4 1983009808
        %v254 = vunpack.c.0.s8 %v253
        %v255 = vperm.slane %v249, %v254
        %v257 = vunpack.c.l.s4 1983009808
        %v258 = vunpack.c.0.s8 %v257
        %v259 = vperm.slane %v251, %v258
        %v260 = vrot.slane %v246, 4
        %v261 = vsel %vm248, %v260, %v244
        %v262 = vrot.slane %v244, 4
        %v263 = vsel %vm248, %v246, %v262
        %v265 = vunpack.c.l.s4 1983009808
        %v266 = vunpack.c.0.s8 %v265
        %v267 = vperm.slane %v261, %v266
        %v269 = vunpack.c.l.s4 1983009808
        %v270 = vunpack.c.0.s8 %v269
        %v271 = vperm.slane %v263, %v270
        %v272 = vrot.slane %v267, 4
        %v273 = vsel %vm248, %v272, %v255
        %v274 = vrot.slane %v255, 4
        %v275 = vsel %vm248, %v267, %v274
        %v277 = vunpack.c.l.s4 1934713408
        %v278 = vunpack.c.0.s8 %v277
        %v279 = vperm.slane %v273, %v278
        %v281 = vunpack.c.l.s4 1934713408
        %v282 = vunpack.c.0.s8 %v281
        %v283 = vperm.slane %v275, %v282
        %v284 = vrot.slane %v271, 4
        %v285 = vsel %vm248, %v284, %v259
        %v286 = vrot.slane %v259, 4
        %v287 = vsel %vm248, %v271, %v286
        %v289 = vunpack.c.l.s4 1934713408
        %v290 = vunpack.c.0.s8 %v289
        %v291 = vperm.slane %v285, %v290
        %v293 = vunpack.c.l.s4 1934713408
        %v294 = vunpack.c.0.s8 %v293
        %v295 = vperm.slane %v287, %v294
        %v296 = vrot.slane %v279, 4
        %v297 = vsel %vm248, 0.0, %v296
        %v298 = vrot.slane %v283, 4
        %v299 = vsel %vm248, 0.0, %v298
        %v300 = vrot.slane %v291, 4
        %v301 = vsel %vm248, 0.0, %v300
        %v302 = vrot.slane %v295, 4
        %v303 = vsel %vm248, 0.0, %v302
        %305 = vrot.lane.b32.xlu0 %v297, 16
        %v306 = vpop.permute.xlu0 %305
        %309 = vrot.lane.b32.xlu0 %v283, 32
        %v310 = vpop.permute.xlu0 %309
        %313 = vrot.lane.b32.xlu0 %v299, 48
        %v314 = vpop.permute.xlu0 %313
        %317 = vrot.lane.b32.xlu0 %v291, 64
        %v318 = vpop.permute.xlu0 %317
        %321 = vrot.lane.b32.xlu0 %v301, 80
        %v322 = vpop.permute.xlu0 %321
        %325 = vrot.lane.b32.xlu0 %v295, 96
        %v326 = vpop.permute.xlu0 %325
        %329 = vrot.lane.b32.xlu0 %v303, 112
        %v330 = vpop.permute.xlu0 %329
        %vm332 = vcmask 130048
        %v333 = vsel %vm332, %v279, %v306
        %vm334 = vcmask 261120
        %v335 = vsel %vm334, %v333, %v310
        %vm336 = vcmask 392192
        %v337 = vsel %vm336, %v335, %v314
        %vm338 = vcmask 523264
        %v339 = vsel %vm338, %v337, %v318
        %vm340 = vcmask 654336
        %v341 = vsel %vm340, %v339, %v322
        %vm342 = vcmask 785408
        %v343 = vsel %vm342, %v341, %v326
        %vm344 = vcmask 916480
        %v345 = vsel %vm344, %v343, %v330
        %346 = vst [vmem:[#allocation2] sm:$0xf] %v345
        %s347 = ssub.s32 %s241, 1
        %p348 = scmp.gt.s32.totalorder %s347, 0
        %s349 = scalar_select %p348, %s347, 0
        %s350 = scalar_lea.vmem %s196, %s349 [#allocation4]
        %v351 = vld [vmem:[%s350] sm:$0x1]
        %v352 = vld [vmem:[%s350 + $0x10] sm:$0x1]
        %v353 = vld [vmem:[%s350 + $0x20] sm:$0x1]
        %v354 = vld [vmem:[%s350 + $0x30] sm:$0x1]
        %s355 = sadd.s32 %s241, 8
        %p356 = scmp.lt.s32.totalorder %s355, 15
        %s357 = scalar_select %p356, %s355, 15
        %s358 = scalar_lea.vmem %s196, %s357 [#allocation4]
        %v359 = vld [vmem:[%s358] sm:$0x1]
        %v360 = vld [vmem:[%s358 + $0x10] sm:$0x1]
        %v361 = vld [vmem:[%s358 + $0x20] sm:$0x1]
        %v362 = vld [vmem:[%s358 + $0x30] sm:$0x1]
        %p363 = scmp.gt.s32.totalorder %s27, 0
        %s364 = scalar_select %p363, 1, 0
        %v365 = vstv %s364
        %vm366 = vcmp.eq.s32.totalorder %v365, 1
        %v367 = vsel %vm366, %v351, 0.0
        %v368 = vsel %vm366, %v352, 0.0
        %v369 = vsel %vm366, %v353, 0.0
        %v370 = vsel %vm366, %v354, 0.0
        %v375 = vrot.slane %v368, 7
        %vm376 = vcmask 1041409
        %v377 = vsel %vm376, %v375, %v367
        %vm378 = vcmask 1045509
        %v379 = vsel %vm378, %v375, %v377
        %v380 = vrot.slane %v369, 6
        %vm381 = vcmask 1042434
        %v382 = vsel %vm381, %v380, %v379
        %vm383 = vcmask 1046534
        %v384 = vsel %vm383, %v380, %v382
        %v385 = vrot.slane %v370, 5
        %vm386 = vcmask 1043459
        %v387 = vsel %vm386, %v385, %v384
        %vm388 = vcmask 1047559
        %v389 = vsel %vm388, %v385, %v387
        %390 = vrot.lane.b32.xlu0 %v389, 112
        %v391 = vpop.permute.xlu0 %390
        %vm393 = vcmask 1044352
        %394 = vst.msk [vmem:[#allocation2 + $0x4] sm:$0xf] %vm393, %v391
        %p395 = scmp.lt.s32.totalorder %s27, 1
        %s396 = scalar_select %p395, 1, 0
        %v397 = vstv %s396
        %vm398 = vcmp.eq.s32.totalorder %v397, 1
        %v399 = vsel %vm398, %v359, 0.0
        %v400 = vsel %vm398, %v360, 0.0
        %v401 = vsel %vm398, %v361, 0.0
        %v402 = vsel %vm398, %v362, 0.0
        %v407 = vrot.slane %v400, 7
        %v408 = vsel %vm376, %v407, %v399
        %v409 = vsel %vm378, %v407, %v408
        %v410 = vrot.slane %v401, 6
        %v411 = vsel %vm381, %v410, %v409
        %v412 = vsel %vm383, %v410, %v411
        %v413 = vrot.slane %v402, 5
        %v414 = vsel %vm386, %v413, %v412
        %v415 = vsel %vm388, %v413, %v414
        %vm417 = vcmask 125952
        %418 = vst.msk [vmem:[#allocation2 + $0x4] sm:$0xf] %vm417, %v415
        %v419 = vlaneseq
        %v420 = vand.u32 %v419, 127
        %vm421 = vcmp.lt.s32.totalorder %v420, 0
        %v422 = vsub.s32 0, %v420
        %v423 = vsel %vm421, %v422, %v420
        %v424 = vshrl.u32 %v423, 4
        %v425 = vand.u32 %v423, 15
        %v426 = vsub.s32 0, %v425
        %v427 = vsel %vm421, %v426, %v425
        %vm428 = vcmp.ne.s32.totalorder %v427, 0
        %vm429 = vcmp.lt.s32.totalorder %v427, 0
        %vm430 = vmand %vm429, %vm428
        %v431 = vadd.s32 %v427, 16
        %v432 = vsel %vm430, %v431, %v427
        %vm433 = vcmp.ne.s32.totalorder %v432, 0
        %vm434 = vcmp.ne.s32.totalorder %v432, 15
        %v435 = vld [vmem:[#allocation2] sm:$0xff]
        %437 = vst [vmem:[#allocation1] ss:$2 sm:$0xff] %v435
        %v438 = vld.sshfl [vmem:[#allocation1] sm:$0xff pattern:$0x75316420]
        %v439 = vld.sshfl [vmem:[#allocation1 + $0x8] sm:$0xff pattern:$0x75316420]
        %442 = vrot.lane.b32.xlu0 %v438, 17
        %v443 = vpop.permute.xlu0 %442
        %444 = vrot.lane.b32.xlu0 %v439, 17
        %v445 = vpop.permute.xlu0 %444
        %vm446 = vcmp.lt.s32.totalorder %v420, 17
        %v447 = vsel %vm446, %v445, %v443
        %v448 = vsel %vm433, 1, 0
        %vm449 = vcmp.eq.s32.totalorder %v448, 1
        %v450 = vsel %vm449, %v447, 0.0
        %451 = vst [vmem:[#allocation3] sm:$0xf] %v450
        %452 = vst [vmem:[#allocation1] ss:$2 sm:$0xff] %v435
        %v453 = vld.sshfl [vmem:[#allocation1] sm:$0xff pattern:$0x75316420]
        %v454 = vld.sshfl [vmem:[#allocation1 + $0x8] sm:$0xff pattern:$0x75316420]
        %457 = vrot.lane.b32.xlu0 %v453, 16
        %v458 = vpop.permute.xlu0 %457
        %459 = vrot.lane.b32.xlu0 %v454, 16
        %v460 = vpop.permute.xlu0 %459
        %vm461 = vcmp.lt.s32.totalorder %v420, 16
        %v462 = vsel %vm461, %v460, %v458
        %463 = vst [vmem:[#allocation3 + $0x4] sm:$0xf] %v462
        %464 = vst [vmem:[#allocation1] ss:$2 sm:$0xff] %v435
        %v465 = vld.sshfl [vmem:[#allocation1] sm:$0xff pattern:$0x75316420]
        %v466 = vld.sshfl [vmem:[#allocation1 + $0x8] sm:$0xff pattern:$0x75316420]
        %469 = vrot.lane.b32.xlu0 %v465, 15
        %v470 = vpop.permute.xlu0 %469
        %471 = vrot.lane.b32.xlu0 %v466, 15
        %v472 = vpop.permute.xlu0 %471
        %vm473 = vcmp.lt.s32.totalorder %v420, 15
        %v474 = vsel %vm473, %v472, %v470
        %v475 = vsel %vm434, 1, 0
        %vm476 = vcmp.eq.s32.totalorder %v475, 1
        %v477 = vsel %vm476, %v474, 0.0
        %478 = vst [vmem:[#allocation3 + $0x8] sm:$0xf] %v477
        %479 = vst [vmem:[#allocation1] ss:$2 sm:$0xff] %v435
        %v480 = vld.sshfl [vmem:[#allocation1] sm:$0xff pattern:$0x75316420]
        %v481 = vld.sshfl [vmem:[#allocation1 + $0x8] sm:$0xff pattern:$0x75316420]
        %484 = vrot.lane.b32.xlu0 %v480, 1
        %v485 = vpop.permute.xlu0 %484
        %486 = vrot.lane.b32.xlu0 %v481, 1
        %v487 = vpop.permute.xlu0 %486
        %vm488 = vcmp.lt.s32.totalorder %v420, 1
        %v489 = vsel %vm488, %v487, %v485
        %v490 = vsel %vm449, %v489, 0.0
        %491 = vst [vmem:[#allocation3 + $0xc] sm:$0xf] %v490
        %492 = vst [vmem:[#allocation3 + $0x10] sm:$0xf] %v435
        %493 = vst [vmem:[#allocation1] ss:$2 sm:$0xff] %v435
        %v494 = vld.sshfl [vmem:[#allocation1] sm:$0xff pattern:$0x75316420]
        %v495 = vld.sshfl [vmem:[#allocation1 + $0x8] sm:$0xff pattern:$0x75316420]
        %498 = vrot.lane.b32.xlu0 %v494, 127
        %v499 = vpop.permute.xlu0 %498
        %500 = vrot.lane.b32.xlu0 %v495, 127
        %v501 = vpop.permute.xlu0 %500
        %vm502 = vcmp.lt.s32.totalorder %v420, 127
        %v503 = vsel %vm502, %v499, %v501
        %v504 = vsel %vm476, %v503, 0.0
        %505 = vst [vmem:[#allocation3 + $0x14] sm:$0xf] %v504
        %506 = vst [vmem:[#allocation1] ss:$2 sm:$0xff] %v435
        %v507 = vld.sshfl [vmem:[#allocation1] sm:$0xff pattern:$0x75316420]
        %v508 = vld.sshfl [vmem:[#allocation1 + $0x8] sm:$0xff pattern:$0x75316420]
        %511 = vrot.lane.b32.xlu0 %v507, 113
        %v512 = vpop.permute.xlu0 %511
        %513 = vrot.lane.b32.xlu0 %v508, 113
        %v514 = vpop.permute.xlu0 %513
        %vm515 = vcmp.lt.s32.totalorder %v420, 113
        %v516 = vsel %vm515, %v512, %v514
        %v517 = vsel %vm449, %v516, 0.0
        %518 = vst [vmem:[#allocation3 + $0x18] sm:$0xf] %v517
        %519 = vst [vmem:[#allocation1] ss:$2 sm:$0xff] %v435
        %v520 = vld.sshfl [vmem:[#allocation1] sm:$0xff pattern:$0x75316420]
        %v521 = vld.sshfl [vmem:[#allocation1 + $0x8] sm:$0xff pattern:$0x75316420]
        %524 = vrot.lane.b32.xlu0 %v520, 112
        %v525 = vpop.permute.xlu0 %524
        %526 = vrot.lane.b32.xlu0 %v521, 112
        %v527 = vpop.permute.xlu0 %526
        %vm528 = vcmp.lt.s32.totalorder %v420, 112
        %v529 = vsel %vm528, %v525, %v527
        %530 = vst [vmem:[#allocation3 + $0x1c] sm:$0xf] %v529
        %531 = vst [vmem:[#allocation1] ss:$2 sm:$0xff] %v435
        %v532 = vld.sshfl [vmem:[#allocation1] sm:$0xff pattern:$0x75316420]
        %v533 = vld.sshfl [vmem:[#allocation1 + $0x8] sm:$0xff pattern:$0x75316420]
        %536 = vrot.lane.b32.xlu0 %v532, 111
        %v537 = vpop.permute.xlu0 %536
        %538 = vrot.lane.b32.xlu0 %v533, 111
        %v539 = vpop.permute.xlu0 %538
        %vm540 = vcmp.lt.s32.totalorder %v420, 111
        %v541 = vsel %vm540, %v537, %v539
        %v542 = vsel %vm476, %v541, 0.0
        %543 = vst [vmem:[#allocation3 + $0x20] sm:$0xf] %v542
        %v544 = vld [vmem:[#allocation7] sm:$0xff]
        %v545 = vld [vmem:[#allocation3] sm:$0xff]
        %v546 = vld [vmem:[#allocation3 + $0x8] sm:$0xff]
        %v547 = vld [vmem:[#allocation3 + $0x10] sm:$0xff]
        %v548 = vld [vmem:[#allocation3 + $0x18] sm:$0xff]
        %v549 = vld [vmem:[#allocation3 + $0x20] sm:$0xf]
        %vm550 = vcmask 293888
        %v552 = vsel %vm550, %v544, 0
        %vm554 = vcmask 1043456
        %v556 = vsel %vm554, %v549, 0
        %558 = vmatpush.msra.mxu0 0.0
        %559 = vmatpush.msra.mxu0 0.0
        %560 = vmatpush.msra.mxu0 0.0
        %561 = vmatpush.msra.mxu0 0.0
        %562 = vmatpush.msra.mxu0 0.0
        %563 = vmatpush.msra.mxu0 0.0
        %564 = vmatpush.msra.mxu0 0.0
        %565 = vmatpush.msra.mxu0 0.0
        %566 = vmatpush.msra.mxu0 0.0
        %567 = vmatpush.msra.mxu0 0.0
        %568 = vmatpush.msra.mxu0 0.0
        %569 = vmatpush.msra.mxu0 %v556
        %570 = vmatpush.msra.mxu0 %v548
        %571 = vmatpush.msra.mxu0 %v547
        %572 = vmatpush.msra.mxu0 %v546
        %573 = vmatpush.msra.mxu0 %v545
        %574 = vmatmul.f32.gmra.mxu0 %v552
        %v575 = vpop.f32.mrf.mxu0
        %v576 = vadd.f32 0.0, %v575
        %577 = vdwg.mxu0
        %578 = vst [vmem:[%s222] sm:$0xff] %v576
        %579 = vadd.xlane.f32.xlu0 %v576
        %v580 = vpop.xlane.xlu0 %579
        %vm581 = vcmask 7168
        %582 = vst.msk [vmem:[%s240] sm:$0xff] %vm581, %v580
        %v583 = vmul.f32 %v576, %v576
        %584 = vadd.xlane.f32.xlu0 %v583
        %v585 = vpop.xlane.xlu0 %584
        %vm586 = vcmask 15368
        %587 = vst.msk [vmem:[%s240] sm:$0xff] %vm586, %v585
        %s588 = sand.u32 %s91, 1
        %s589 = scalar_lea.sflag [#allocation6], %s588
        %s590 = sand.u32 %s91, 1
        %s591 = smul.addr %s590, 8
        %s592 = scalar_lea.vmem [#allocation9], %s591
        %p593 = scmp.lt.s32.totalorder %s26, 1
        %s594 = scalar_select %p593, %s26, 1
        %p595 = scmp.lt.s32.totalorder %s27, 1
        %s596 = scalar_select %p595, %s27, 1
        %s597 = smul.addr %s594, 2
        %s598 = sadd.s32 %s596, %s597
        %s599 = smul.addr %s598, 8
        %s600 = scalar_lea.vmem %s3, %s599
        // Predicated region
        $region37: #{tpu_custom_call.1} parent=27 // pred_check
          %p601 = pneg %p101
        $region38: #{tpu_custom_call.1} parent=27 // pred_check_branch
          %603 = sbr.rel (%p601) target = $region40
        $region39: #{tpu_custom_call.1} parent=27 // pred_region
          %605 = vsyncadd %s589, 0
          %s606 = smul.addr %s26, 2
          %s607 = sadd.s32 %s27, %s606
          %s608 = smul.addr %s607, 8
          %s609 = scalar_lea.hbm %s2, %s608
          %s611 = sshll.u32 %s592, 4
          %s612 = int_to_ptr.vmem [resolvable:$true] %s611
          %s613 = sshll.u32 %s609, 4
          %s614 = int_to_ptr.hbm [resolvable:$true] %s613
          %616 = dma.vmem_to_hbm [thread:$0]  %s612, 128, %s614, %s589
        $region40: #{tpu_custom_call.1} parent=27 // pred_fallthru
          _
        // Predicated region
        $region41: #{tpu_custom_call.1} parent=27 // pred_check
          %p617 = pneg %p129
        $region42: #{tpu_custom_call.1} parent=27 // pred_check_branch
          %619 = sbr.rel (%p617) target = $region44
        $region43: #{tpu_custom_call.1} parent=27 // pred_region
          _
        $region44: #{tpu_custom_call.1} parent=27 // pred_fallthru
          _
      $region28: #{tpu_custom_call.1} parent=5 // pred_fallthru
        _
      %p620 = scmp.le.s32.totalorder 2, %s17
      // Predicated region
      $region45: #{tpu_custom_call.1} parent=5 // pred_check
        %p621 = pneg %p620
      $region46: #{tpu_custom_call.1} parent=5 // pred_check_branch
        %623 = sbr.rel (%p621) target = $region48
      $region47: #{tpu_custom_call.1} parent=5 // pred_region
        %s624 = ssub.s32 %s17, 2
        // Predicated region
        $region49: #{tpu_custom_call.1} parent=47 // pred_check
          %p625 = pneg %p107
        $region50: #{tpu_custom_call.1} parent=47 // pred_check_branch
          %627 = sbr.rel (%p625) target = $region52
        $region51: #{tpu_custom_call.1} parent=47 // pred_region
          %s628 = sand.u32 %s92, 1
          %s629 = scalar_lea.sflag [#allocation6], %s628
          %s630 = sand.u32 %s92, 1
          %s631 = smul.addr %s630, 8
          %s632 = scalar_lea.vmem [#allocation9], %s631
          %634 = dma.done %s629, 128
        $region52: #{tpu_custom_call.1} parent=47 // pred_fallthru
          _
        // Predicated region
        $region53: #{tpu_custom_call.1} parent=47 // pred_check
          %p635 = pneg %p135
        $region54: #{tpu_custom_call.1} parent=47 // pred_check_branch
          %637 = sbr.rel (%p635) target = $region56
        $region55: #{tpu_custom_call.1} parent=47 // pred_region
          %p638 = scmp.lt.s32.totalorder %s28, 1
          %s639 = scalar_select %p638, %s28, 1
          %p640 = scmp.lt.s32.totalorder %s29, 1
          %s641 = scalar_select %p640, %s29, 1
          %s642 = smul.addr %s639, 2
          %s643 = sadd.s32 %s641, %s642
          %s644 = smul.addr %s643, 8
          %s645 = scalar_lea.vmem %s3, %s644
        $region56: #{tpu_custom_call.1} parent=47 // pred_fallthru
          _
      $region48: #{tpu_custom_call.1} parent=5 // pred_fallthru
        _
    $region6: #{tpu_custom_call.1} parent=1 // loop_footer
      %s21 = sadd.s32 1, %s17
    $region7: #{tpu_custom_call.1} parent=1 // loop_footer_branch
      %16 = sbr.rel target = $region3
    $region8: #{tpu_custom_call.1} parent=1 // loop_exit
      _
    %646 = vsyncpa [#allocation5], 1
    %s647 = scalar_lea.sflag [#allocation5], 1
    %648 = vsyncpa %s647, 1
    %649 = vsyncpa [#allocation8], 1
    %650 = vsyncpa [#allocation6], 1
    %s651 = scalar_lea.sflag [#allocation6], 1
    %652 = vsyncpa %s651, 1

</llo_original>
